<compile_context>
chip_gen: v5e
topology: v5e:2x2
jax: 0.10.0
libtpu: 0.0.40
codegen_flags: <defaults>
</compile_context>

<pallas_src>
import jax
import jax.numpy as jnp
from jax.experimental import pallas as pl
from jax.experimental.pallas import tpu as pltpu


raw_text = ('We are about to study the idea of a computational process.\n'
            'Computational processes are abstract beings that inhabit computers.\n'
            'As they evolve, processes manipulate other abstract things called data.\n'
            'The evolution of a process is directed by a pattern of rules\n'
            'called a program. People create programs to direct processes. In effect,\n'
            'we conjure the spirits of the computer with our spells.').split()

VOCAB_SIZE = len(set(raw_text))                  # 49
EMBEDDING_DIM = 16
CONTEXT_SIZE = 2
HIDDEN = 128
NUM_CTX = 2 * CONTEXT_SIZE                       # 4 context words per example
IN_DIM = NUM_CTX * EMBEDDING_DIM                 # 64


def cbow_kernel(ids_ref, emb_ref, w1_ref, b1_ref, w2_ref, b2_ref, o_ref):
    # ids_ref: (TILE_B, NUM_CTX) int32   emb_ref: (V, EMB)
    # w1_ref:  (IN_DIM, HIDDEN)          b1_ref:  (1, HIDDEN)
    # w2_ref:  (HIDDEN, V_PAD)           b2_ref:  (1, V_PAD)  (padded cols = -1e30)
    # o_ref:   (TILE_B, V_PAD)
    tile_b, num_ctx = ids_ref.shape
    vocab, emb_dim = emb_ref.shape
    hidden = w1_ref.shape[1]

    ids = ids_ref[...]                                   # (TILE_B, NUM_CTX)
    emb = emb_ref[...]                                   # (V, EMB)
    col = jax.lax.broadcasted_iota(jnp.int32, (tile_b, vocab), 1)

    # Embedding gather fused as one-hot matmuls (exact row selection, no
    # dynamic indexing), accumulating directly into the first linear layer.
    h = jnp.broadcast_to(b1_ref[...], (tile_b, hidden)).astype(jnp.float32)
    for j in range(num_ctx):                             # static unroll (4)
        onehot = (ids[:, j:j + 1] == col).astype(jnp.float32)     # (TILE_B, V)
        ej = jnp.dot(onehot, emb, preferred_element_type=jnp.float32)  # (TILE_B, EMB)
        w1_j = w1_ref[j * emb_dim:(j + 1) * emb_dim, :]            # (EMB, HIDDEN)
        h = h + jnp.dot(ej, w1_j, preferred_element_type=jnp.float32)

    h = jnp.maximum(h, 0.0)                                        # ReLU
    logits = jnp.dot(h, w2_ref[...],
                     preferred_element_type=jnp.float32) + b2_ref[...]

    # log_softmax over the (padded, lane-dense) vocab axis; padded columns
    # carry bias -1e30 so exp() underflows to 0 and they never leak into lse.
    m = jnp.max(logits, axis=-1, keepdims=True)
    s = logits - m
    lse = jnp.log(jnp.sum(jnp.exp(s), axis=-1, keepdims=True))
    o_ref[...] = s - lse


def cbow_forward(inputs, emb_table, w1, b1, w2, b2, *, tile_b=8):
    """inputs: (NUM_CTX,) or (B, NUM_CTX) int token ids -> (1 or B, VOCAB) log-probs."""
    ids = inputs.reshape(1, -1) if inputs.ndim == 1 else inputs
    ids = ids.astype(jnp.int32)
    n = ids.shape[0]

    # Pad batch to a multiple of the tile (extra rows computed then dropped).
    n_pad = ((n + tile_b - 1) // tile_b) * tile_b
    if n_pad != n:
        ids = jnp.pad(ids, ((0, n_pad - n), (0, 0)))

    # Pad the vocab/lane axis of linear2 up to a multiple of 128 lanes.
    v = w2.shape[1]
    v_pad = ((v + 127) // 128) * 128
    w2p = jnp.zeros((w2.shape[0], v_pad), w2.dtype).at[:, :v].set(w2)
    b2p = jnp.full((1, v_pad), -1e30, dtype=b2.dtype).at[0, :v].set(b2)
    b1_2d = b1.reshape(1, -1)

    grid = (n_pad // tile_b,)
    out = pl.pallas_call(
        cbow_kernel,
        out_shape=jax.ShapeDtypeStruct((n_pad, v_pad), jnp.float32),
        grid=grid,
        in_specs=[
            # Per-step block of token ids.
            pl.BlockSpec((tile_b, ids.shape[1]), lambda i: (i, 0)),
            # Table / weights / biases: constant block index -> VMEM-resident.
            pl.BlockSpec(emb_table.shape, lambda i: (0, 0)),
            pl.BlockSpec(w1.shape, lambda i: (0, 0)),
            pl.BlockSpec((1, b1.shape[0]), lambda i: (0, 0)),
            pl.BlockSpec((w2.shape[0], v_pad), lambda i: (0, 0)),
            pl.BlockSpec((1, v_pad), lambda i: (0, 0)),
        ],
        out_specs=pl.BlockSpec((tile_b, v_pad), lambda i: (i, 0)),
        compiler_params=pltpu.CompilerParams(
            dimension_semantics=("parallel",)),
    )(ids, emb_table, w1, b1_2d, w2p, b2p)

    return out[:n, :v]


if __name__ == "__main__":
    key = jax.random.PRNGKey(0)
    k_emb, k_w1, k_b1, k_w2, k_b2, k_in = jax.random.split(key, 6)

    # Deterministic synthetic parameters (shapes from the module __init__).
    emb_table = jax.random.normal(k_emb, (VOCAB_SIZE, EMBEDDING_DIM), jnp.float32)
    w1 = jax.random.normal(k_w1, (IN_DIM, HIDDEN), jnp.float32) * 0.1   # (in, out)
    b1 = jax.random.normal(k_b1, (HIDDEN,), jnp.float32) * 0.1
    w2 = jax.random.normal(k_w2, (HIDDEN, VOCAB_SIZE), jnp.float32) * 0.1
    b2 = jax.random.normal(k_b2, (VOCAB_SIZE,), jnp.float32) * 0.1

    # Small batch of context windows (each row = one module forward).
    B = 16
    inputs = jax.random.randint(k_in, (B, NUM_CTX), 0, VOCAB_SIZE, jnp.int32)

    log_probs = cbow_forward(inputs, emb_table, w1, b1, w2, b2, tile_b=8)
    log_probs = jax.block_until_ready(log_probs)

    # Pure-JAX reference (per-row CBOW forward).
    x = jnp.take(emb_table, inputs.reshape(-1), axis=0).reshape(B, IN_DIM)
    ref = jax.nn.log_softmax(jnp.maximum(x @ w1 + b1, 0.0) @ w2 + b2, axis=-1)
    assert log_probs.shape == (B, VOCAB_SIZE)
    assert jnp.allclose(log_probs, ref, atol=1e-4, rtol=1e-4)

    # Single-context call, matching the original PyTorch forward signature.
    single = cbow_forward(inputs[0], emb_table, w1, b1, w2, b2)
    single = jax.block_until_ready(single)
    assert single.shape == (1, VOCAB_SIZE)
    assert jnp.allclose(single, ref[0:1], atol=1e-4, rtol=1e-4)

    print("KERNEL_OK")
</pallas_src>

<mosaic_0001>
module attributes {stable_mosaic.version = 11 : i64} {
  func.func @cbow_kernel(%arg0: i32, %arg1: memref<8x4xi32, #tpu.memory_space<vmem>>, %arg2: memref<49x16xf32, #tpu.memory_space<vmem>>, %arg3: memref<64x128xf32, #tpu.memory_space<vmem>>, %arg4: memref<1x128xf32, #tpu.memory_space<vmem>>, %arg5: memref<128x128xf32, #tpu.memory_space<vmem>>, %arg6: memref<1x128xf32, #tpu.memory_space<vmem>>, %arg7: memref<8x128xf32, #tpu.memory_space<vmem>>) attributes {dimension_semantics = [#tpu.dimension_semantics<parallel>], iteration_bounds = array<i64: 2>, scalar_prefetch = 0 : i64, scratch_operands = 0 : i64, tpu.core_type = #tpu.core_type<tc>, window_params = [{transform_indices = @transform_0, window_bounds = array<i64: 8, 4>}, {pipeline_mode = #tpu.pipeline_mode<synchronous>, transform_indices = @transform_1, window_bounds = array<i64: 49, 16>}, {pipeline_mode = #tpu.pipeline_mode<synchronous>, transform_indices = @transform_2, window_bounds = array<i64: 64, 128>}, {pipeline_mode = #tpu.pipeline_mode<synchronous>, transform_indices = @transform_3, window_bounds = array<i64: 1, 128>}, {pipeline_mode = #tpu.pipeline_mode<synchronous>, transform_indices = @transform_4, window_bounds = array<i64: 128, 128>}, {pipeline_mode = #tpu.pipeline_mode<synchronous>, transform_indices = @transform_5, window_bounds = array<i64: 1, 128>}, {transform_indices = @transform_6, window_bounds = array<i64: 8, 128>}]} {
    %c0 = arith.constant 0 : index
    %c0_0 = arith.constant 0 : index
    %0 = vector.load %arg1[%c0, %c0_0] : memref<8x4xi32, #tpu.memory_space<vmem>>, vector<8x4xi32>
    %c0_1 = arith.constant 0 : index
    %c0_2 = arith.constant 0 : index
    %1 = vector.load %arg2[%c0_1, %c0_2] : memref<49x16xf32, #tpu.memory_space<vmem>>, vector<49x16xf32>
    %2 = tpu.iota {dimensions = array<i32: 1>} : vector<8x49xi32>
    %c0_3 = arith.constant 0 : index
    %c0_4 = arith.constant 0 : index
    %3 = vector.load %arg4[%c0_3, %c0_4] : memref<1x128xf32, #tpu.memory_space<vmem>>, vector<1x128xf32>
    %4 = vector.shape_cast %3 : vector<1x128xf32> to vector<1x128xf32>
    %5 = vector.broadcast %4 : vector<1x128xf32> to vector<8x128xf32>
    %6 = vector.extract_strided_slice %0 {offsets = [0, 0], sizes = [8, 1], strides = [1, 1]} : vector<8x4xi32> to vector<8x1xi32>
    %7 = vector.broadcast %6 : vector<8x1xi32> to vector<8x49xi32>
    %8 = arith.cmpi eq, %7, %2 : vector<8x49xi32>
    %9 = arith.extui %8 : vector<8x49xi1> to vector<8x49xi32>
    %10 = arith.sitofp %9 : vector<8x49xi32> to vector<8x49xf32>
    %cst = arith.constant dense<0.000000e+00> : vector<8x16xf32>
    %11 = tpu.matmul %10, %1, %cst {dimension_numbers = #tpu.dot_dimension_numbers<[1], [0], [0], [1], [0, 0, 1, 1], [], []>} : vector<8x49xf32>, vector<49x16xf32>, vector<8x16xf32> -> vector<8x16xf32>
    %c0_5 = arith.constant 0 : index
    %c0_6 = arith.constant 0 : index
    %12 = vector.load %arg3[%c0_5, %c0_6] : memref<64x128xf32, #tpu.memory_space<vmem>>, vector<16x128xf32>
    %cst_7 = arith.constant dense<0.000000e+00> : vector<8x128xf32>
    %13 = tpu.matmul %11, %12, %cst_7 {dimension_numbers = #tpu.dot_dimension_numbers<[1], [0], [0], [1], [0, 0, 1, 1], [], []>} : vector<8x16xf32>, vector<16x128xf32>, vector<8x128xf32> -> vector<8x128xf32>
    %14 = arith.addf %5, %13 : vector<8x128xf32>
    %15 = vector.extract_strided_slice %0 {offsets = [0, 1], sizes = [8, 1], strides = [1, 1]} : vector<8x4xi32> to vector<8x1xi32>
    %16 = vector.broadcast %15 : vector<8x1xi32> to vector<8x49xi32>
    %17 = arith.cmpi eq, %16, %2 : vector<8x49xi32>
    %18 = arith.extui %17 : vector<8x49xi1> to vector<8x49xi32>
    %19 = arith.sitofp %18 : vector<8x49xi32> to vector<8x49xf32>
    %cst_8 = arith.constant dense<0.000000e+00> : vector<8x16xf32>
    %20 = tpu.matmul %19, %1, %cst_8 {dimension_numbers = #tpu.dot_dimension_numbers<[1], [0], [0], [1], [0, 0, 1, 1], [], []>} : vector<8x49xf32>, vector<49x16xf32>, vector<8x16xf32> -> vector<8x16xf32>
    %c16 = arith.constant 16 : index
    %c0_9 = arith.constant 0 : index
    %21 = vector.load %arg3[%c16, %c0_9] : memref<64x128xf32, #tpu.memory_space<vmem>>, vector<16x128xf32>
    %cst_10 = arith.constant dense<0.000000e+00> : vector<8x128xf32>
    %22 = tpu.matmul %20, %21, %cst_10 {dimension_numbers = #tpu.dot_dimension_numbers<[1], [0], [0], [1], [0, 0, 1, 1], [], []>} : vector<8x16xf32>, vector<16x128xf32>, vector<8x128xf32> -> vector<8x128xf32>
    %23 = arith.addf %14, %22 : vector<8x128xf32>
    %24 = vector.extract_strided_slice %0 {offsets = [0, 2], sizes = [8, 1], strides = [1, 1]} : vector<8x4xi32> to vector<8x1xi32>
    %25 = vector.broadcast %24 : vector<8x1xi32> to vector<8x49xi32>
    %26 = arith.cmpi eq, %25, %2 : vector<8x49xi32>
    %27 = arith.extui %26 : vector<8x49xi1> to vector<8x49xi32>
    %28 = arith.sitofp %27 : vector<8x49xi32> to vector<8x49xf32>
    %cst_11 = arith.constant dense<0.000000e+00> : vector<8x16xf32>
    %29 = tpu.matmul %28, %1, %cst_11 {dimension_numbers = #tpu.dot_dimension_numbers<[1], [0], [0], [1], [0, 0, 1, 1], [], []>} : vector<8x49xf32>, vector<49x16xf32>, vector<8x16xf32> -> vector<8x16xf32>
    %c32 = arith.constant 32 : index
    %c0_12 = arith.constant 0 : index
    %30 = vector.load %arg3[%c32, %c0_12] : memref<64x128xf32, #tpu.memory_space<vmem>>, vector<16x128xf32>
    %cst_13 = arith.constant dense<0.000000e+00> : vector<8x128xf32>
    %31 = tpu.matmul %29, %30, %cst_13 {dimension_numbers = #tpu.dot_dimension_numbers<[1], [0], [0], [1], [0, 0, 1, 1], [], []>} : vector<8x16xf32>, vector<16x128xf32>, vector<8x128xf32> -> vector<8x128xf32>
    %32 = arith.addf %23, %31 : vector<8x128xf32>
    %33 = vector.extract_strided_slice %0 {offsets = [0, 3], sizes = [8, 1], strides = [1, 1]} : vector<8x4xi32> to vector<8x1xi32>
    %34 = vector.broadcast %33 : vector<8x1xi32> to vector<8x49xi32>
    %35 = arith.cmpi eq, %34, %2 : vector<8x49xi32>
    %36 = arith.extui %35 : vector<8x49xi1> to vector<8x49xi32>
    %37 = arith.sitofp %36 : vector<8x49xi32> to vector<8x49xf32>
    %cst_14 = arith.constant dense<0.000000e+00> : vector<8x16xf32>
    %38 = tpu.matmul %37, %1, %cst_14 {dimension_numbers = #tpu.dot_dimension_numbers<[1], [0], [0], [1], [0, 0, 1, 1], [], []>} : vector<8x49xf32>, vector<49x16xf32>, vector<8x16xf32> -> vector<8x16xf32>
    %c48 = arith.constant 48 : index
    %c0_15 = arith.constant 0 : index
    %39 = vector.load %arg3[%c48, %c0_15] : memref<64x128xf32, #tpu.memory_space<vmem>>, vector<16x128xf32>
    %cst_16 = arith.constant dense<0.000000e+00> : vector<8x128xf32>
    %40 = tpu.matmul %38, %39, %cst_16 {dimension_numbers = #tpu.dot_dimension_numbers<[1], [0], [0], [1], [0, 0, 1, 1], [], []>} : vector<8x16xf32>, vector<16x128xf32>, vector<8x128xf32> -> vector<8x128xf32>
    %41 = arith.addf %32, %40 : vector<8x128xf32>
    %cst_17 = arith.constant 0.000000e+00 : f32
    %42 = vector.broadcast %cst_17 : f32 to vector<8x128xf32>
    %43 = arith.maximumf %41, %42 : vector<8x128xf32>
    %c0_18 = arith.constant 0 : index
    %c0_19 = arith.constant 0 : index
    %44 = vector.load %arg5[%c0_18, %c0_19] : memref<128x128xf32, #tpu.memory_space<vmem>>, vector<128x128xf32>
    %cst_20 = arith.constant dense<0.000000e+00> : vector<8x128xf32>
    %45 = tpu.matmul %43, %44, %cst_20 {dimension_numbers = #tpu.dot_dimension_numbers<[1], [0], [0], [1], [0, 0, 1, 1], [], []>} : vector<8x128xf32>, vector<128x128xf32>, vector<8x128xf32> -> vector<8x128xf32>
    %c0_21 = arith.constant 0 : index
    %c0_22 = arith.constant 0 : index
    %46 = vector.load %arg6[%c0_21, %c0_22] : memref<1x128xf32, #tpu.memory_space<vmem>>, vector<1x128xf32>
    %47 = vector.broadcast %46 : vector<1x128xf32> to vector<8x128xf32>
    %48 = arith.addf %45, %47 : vector<8x128xf32>
    %cst_23 = arith.constant dense<0xFF800000> : vector<8xf32>
    %49 = vector.multi_reduction <maximumf>, %48, %cst_23 [1] : vector<8x128xf32> to vector<8xf32>
    %50 = vector.shape_cast %49 : vector<8xf32> to vector<8x1xf32>
    %51 = vector.broadcast %50 : vector<8x1xf32> to vector<8x128xf32>
    %52 = arith.subf %48, %51 : vector<8x128xf32>
    %53 = math.exp %52 : vector<8x128xf32>
    %cst_24 = arith.constant dense<0.000000e+00> : vector<8xf32>
    %54 = vector.multi_reduction <add>, %53, %cst_24 [1] : vector<8x128xf32> to vector<8xf32>
    %55 = vector.shape_cast %54 : vector<8xf32> to vector<8x1xf32>
    %56 = math.log %55 : vector<8x1xf32>
    %57 = vector.broadcast %56 : vector<8x1xf32> to vector<8x128xf32>
    %58 = arith.subf %52, %57 : vector<8x128xf32>
    %c0_25 = arith.constant 0 : index
    %c0_26 = arith.constant 0 : index
    %59 = vector.load %arg7[%c0_25, %c0_26] : memref<8x128xf32, #tpu.memory_space<vmem>>, vector<8x128xf32>
    tpu.vector_store %arg7[%c0_25, %c0_26], %58 {strides = array<i32>} : memref<8x128xf32, #tpu.memory_space<vmem>>, vector<8x128xf32>,
    return
  }
  func.func @transform_0(%arg0: i32) -> (i32, i32) {
    %c0_i32 = arith.constant 0 : i32
    %c0_i32_0 = arith.constant 0 : i32
    return %arg0, %c0_i32 : i32, i32
  }
  func.func @transform_1(%arg0: i32) -> (i32, i32) {
    %c0_i32 = arith.constant 0 : i32
    %c0_i32_0 = arith.constant 0 : i32
    %c0_i32_1 = arith.constant 0 : i32
    return %c0_i32, %c0_i32_0 : i32, i32
  }
  func.func @transform_2(%arg0: i32) -> (i32, i32) {
    %c0_i32 = arith.constant 0 : i32
    %c0_i32_0 = arith.constant 0 : i32
    %c0_i32_1 = arith.constant 0 : i32
    return %c0_i32, %c0_i32_0 : i32, i32
  }
  func.func @transform_3(%arg0: i32) -> (i32, i32) {
    %c0_i32 = arith.constant 0 : i32
    %c0_i32_0 = arith.constant 0 : i32
    %c0_i32_1 = arith.constant 0 : i32
    return %c0_i32, %c0_i32_0 : i32, i32
  }
  func.func @transform_4(%arg0: i32) -> (i32, i32) {
    %c0_i32 = arith.constant 0 : i32
    %c0_i32_0 = arith.constant 0 : i32
    %c0_i32_1 = arith.constant 0 : i32
    return %c0_i32, %c0_i32_0 : i32, i32
  }
  func.func @transform_5(%arg0: i32) -> (i32, i32) {
    %c0_i32 = arith.constant 0 : i32
    %c0_i32_0 = arith.constant 0 : i32
    %c0_i32_1 = arith.constant 0 : i32
    return %c0_i32, %c0_i32_0 : i32, i32
  }
  func.func @transform_6(%arg0: i32) -> (i32, i32) {
    %c0_i32 = arith.constant 0 : i32
    %c0_i32_0 = arith.constant 0 : i32
    return %arg0, %c0_i32 : i32, i32
  }
}

</mosaic_0001>

<llo_original>
// kernel: tpu_custom_call.1
$region0: #{tpu_custom_call.1}
  #allocation0 [shape = 'u32[]', space=smem, size = 0x4, offset = 0x4, fixed_abs, tag = 'smem constant byte address 0x4 - core index']
  #allocation1 [shape = 'u32[72,128]{1,0:T(1,128)}', space=vmem, size = 0x9000, scoped, tag = 'internal scratch']
  %s0 = inlined_call_operand.vmem [shape: s32[16,4], index: 0, kind: input, shape index: {}]
  %s1 = inlined_call_operand.vmem [shape: f32[49,16], index: 1, kind: input, shape index: {}]
  %s2 = inlined_call_operand.vmem [shape: f32[64,128], index: 2, kind: input, shape index: {}]
  %s3 = inlined_call_operand.vmem [shape: f32[1,128], index: 3, kind: input, shape index: {}]
  %s4 = inlined_call_operand.hbm [shape: f32[128,128], index: 4, kind: input, shape index: {}]
  %s5 = inlined_call_operand.vmem [shape: f32[1,128], index: 5, kind: input, shape index: {}]
  %s6 = inlined_call_operand.hbm [shape: f32[16,128], index: 6, kind: output, shape index: {}]
  %s7 = sld [smem:[#allocation0]]
  $region61: #{tpu_custom_call.1} parent=0
    _
  %s9 = ssub.s32 1, %s7
  %s10 = scalar_select 0, %s9, %s7
  $region1: #{tpu_custom_call.1} parent=0
    #allocation2 [shape = 'u8[65536]{0}', space=vmem, size = 0x10000, scoped, tag = 'input window, operand 4, single buffered']
    #allocation3 [shape = 's32[2]{0}', space=sflag, size = 0x8, scoped, tag = 'scoped memory for tpu_custom_call.1']
    #allocation4 [shape = 's32[2]{0}', space=sflag, size = 0x8, scoped, tag = 'scoped memory for tpu_custom_call.1']
    #allocation5 [shape = 'u8[8192]{0}', space=vmem, size = 0x2000, scoped, tag = 'output window, operand 0']
    %11 = vsyncpa [#allocation3], 0
    %12 = vsyncpa [#allocation4], 0
    %s13 = scalar_lea.sflag [#allocation4], 1
    %14 = vsyncpa %s13, 0
    loop: start=0, step=1, limit=4
    $region2: #{tpu_custom_call.1} parent=1 // loop_pre_header
      _
    $region3: #{tpu_custom_call.1} parent=1 // loop_header
      %s16 = sphi 0, %s20
      %p17 = scmp.ge.s32.totalorder %s16, 4
      %s26 = sphi 0, %s28
      %s29 = sphi 0, %s26
      %s30 = sphi 0, %s29
      %s46 = sphi 0, %s30
      %s50 = sphi 0, %s50
      %s52 = sphi 0, %s50
      %s53 = sphi 0, %s52
      %s67 = sphi 0, %s53
      %s71 = sphi 0, %s71
      %s73 = sphi 0, %s71
      %s74 = sphi 0, %s73
      %s88 = sphi 0, %s74
      %s92 = sphi 0, %s92
      %s94 = sphi 0, %s92
      %s95 = sphi 0, %s94
      %s109 = sphi 0, %s95
      %s113 = sphi 0, %s113
      %s115 = sphi 0, %s113
      %s116 = sphi 0, %s115
      %s130 = sphi 0, %s116
      %s134 = sphi 0, %s134
      %s136 = sphi 0, %s134
      %s137 = sphi 0, %s136
      %s151 = sphi 0, %s137
      %s157 = sphi 0, %s159
      %s160 = sphi 0, %s157
      %s161 = sphi 0, %s160
      %s177 = sphi 0, %s161
    $region4: #{tpu_custom_call.1} parent=1 // loop_header_branch
      %19 = sbr.rel (%p17) target = $region8
    $region5: #{tpu_custom_call.1} parent=1 // loop_body
      %s21 = ssub.s32 %s16, 1
      %s22 = ssub.s32 %s16, 2
      %s23 = sadd.s32 %s16, 1
      %s24 = ssub.s32 %s16, %s23
      %p25 = scmp.eq.s32.totalorder %s24, 0
      %s27 = sadd.s32 %s26, 1
      %s28 = scalar_select %p25, %s26, %s27
      %p31 = pneg %p25
      %p32 = scmp.eq.s32.totalorder %s16, 1
      %p33 = por %p31, %p32
      %p34 = scmp.ne.s32.totalorder %s26, %s29
      %p35 = scmp.eq.s32.totalorder %s16, 0
      %p36 = por %p34, %p35
      %p37 = scmp.ne.s32.totalorder %s26, %s29
      %p38 = scmp.eq.s32.totalorder %s21, 1
      %p39 = por %p37, %p38
      %p40 = scmp.ne.s32.totalorder %s29, %s30
      %p41 = scmp.eq.s32.totalorder %s21, 0
      %p42 = por %p40, %p41
      %p43 = scmp.ne.s32.totalorder %s29, %s30
      %p44 = scmp.eq.s32.totalorder %s22, 1
      %p45 = por %p43, %p44
      %p47 = scmp.ne.s32.totalorder %s30, %s46
      %p48 = scmp.eq.s32.totalorder %s22, 0
      %p49 = por %p47, %p48
      %s51 = sadd.s32 %s50, 1
      %p54 = scmp.eq.s32.totalorder %s16, 1
      %p55 = scmp.ne.s32.totalorder %s50, %s52
      %p56 = scmp.eq.s32.totalorder %s16, 0
      %p57 = por %p55, %p56
      %p58 = scmp.ne.s32.totalorder %s50, %s52
      %p59 = scmp.eq.s32.totalorder %s21, 1
      %p60 = por %p58, %p59
      %p61 = scmp.ne.s32.totalorder %s52, %s53
      %p62 = scmp.eq.s32.totalorder %s21, 0
      %p63 = por %p61, %p62
      %p64 = scmp.ne.s32.totalorder %s52, %s53
      %p65 = scmp.eq.s32.totalorder %s22, 1
      %p66 = por %p64, %p65
      %p68 = scmp.ne.s32.totalorder %s53, %s67
      %p69 = scmp.eq.s32.totalorder %s22, 0
      %p70 = por %p68, %p69
      %s72 = sadd.s32 %s71, 1
      %p75 = scmp.eq.s32.totalorder %s16, 1
      %p76 = scmp.ne.s32.totalorder %s71, %s73
      %p77 = scmp.eq.s32.totalorder %s16, 0
      %p78 = por %p76, %p77
      %p79 = scmp.ne.s32.totalorder %s71, %s73
      %p80 = scmp.eq.s32.totalorder %s21, 1
      %p81 = por %p79, %p80
      %p82 = scmp.ne.s32.totalorder %s73, %s74
      %p83 = scmp.eq.s32.totalorder %s21, 0
      %p84 = por %p82, %p83
      %p85 = scmp.ne.s32.totalorder %s73, %s74
      %p86 = scmp.eq.s32.totalorder %s22, 1
      %p87 = por %p85, %p86
      %p89 = scmp.ne.s32.totalorder %s74, %s88
      %p90 = scmp.eq.s32.totalorder %s22, 0
      %p91 = por %p89, %p90
      %s93 = sadd.s32 %s92, 1
      %p96 = scmp.eq.s32.totalorder %s16, 1
      %p97 = scmp.ne.s32.totalorder %s92, %s94
      %p98 = scmp.eq.s32.totalorder %s16, 0
      %p99 = por %p97, %p98
      %p100 = scmp.ne.s32.totalorder %s92, %s94
      %p101 = scmp.eq.s32.totalorder %s21, 1
      %p102 = por %p100, %p101
      %p103 = scmp.ne.s32.totalorder %s94, %s95
      %p104 = scmp.eq.s32.totalorder %s21, 0
      %p105 = por %p103, %p104
      %p106 = scmp.ne.s32.totalorder %s94, %s95
      %p107 = scmp.eq.s32.totalorder %s22, 1
      %p108 = por %p106, %p107
      %p110 = scmp.ne.s32.totalorder %s95, %s109
      %p111 = scmp.eq.s32.totalorder %s22, 0
      %p112 = por %p110, %p111
      %s114 = sadd.s32 %s113, 1
      %p117 = scmp.eq.s32.totalorder %s16, 1
      %p118 = scmp.ne.s32.totalorder %s113, %s115
      %p119 = scmp.eq.s32.totalorder %s16, 0
      %p120 = por %p118, %p119
      %p121 = scmp.ne.s32.totalorder %s113, %s115
      %p122 = scmp.eq.s32.totalorder %s21, 1
      %p123 = por %p121, %p122
      %p124 = scmp.ne.s32.totalorder %s115, %s116
      %p125 = scmp.eq.s32.totalorder %s21, 0
      %p126 = por %p124, %p125
      %p127 = scmp.ne.s32.totalorder %s115, %s116
      %p128 = scmp.eq.s32.totalorder %s22, 1
      %p129 = por %p127, %p128
      %p131 = scmp.ne.s32.totalorder %s116, %s130
      %p132 = scmp.eq.s32.totalorder %s22, 0
      %p133 = por %p131, %p132
      %s135 = sadd.s32 %s134, 1
      %p138 = scmp.eq.s32.totalorder %s16, 1
      %p139 = scmp.ne.s32.totalorder %s134, %s136
      %p140 = scmp.eq.s32.totalorder %s16, 0
      %p141 = por %p139, %p140
      %p142 = scmp.ne.s32.totalorder %s134, %s136
      %p143 = scmp.eq.s32.totalorder %s21, 1
      %p144 = por %p142, %p143
      %p145 = scmp.ne.s32.totalorder %s136, %s137
      %p146 = scmp.eq.s32.totalorder %s21, 0
      %p147 = por %p145, %p146
      %p148 = scmp.ne.s32.totalorder %s136, %s137
      %p149 = scmp.eq.s32.totalorder %s22, 1
      %p150 = por %p148, %p149
      %p152 = scmp.ne.s32.totalorder %s137, %s151
      %p153 = scmp.eq.s32.totalorder %s22, 0
      %p154 = por %p152, %p153
      %s155 = ssub.s32 %s16, %s23
      %p156 = scmp.eq.s32.totalorder %s155, 0
      %s158 = sadd.s32 %s157, 1
      %s159 = scalar_select %p156, %s157, %s158
      %p162 = pneg %p156
      %p163 = scmp.eq.s32.totalorder %s16, 1
      %p164 = por %p162, %p163
      %p165 = scmp.ne.s32.totalorder %s157, %s160
      %p166 = scmp.eq.s32.totalorder %s16, 0
      %p167 = por %p165, %p166
      %p168 = scmp.ne.s32.totalorder %s157, %s160
      %p169 = scmp.eq.s32.totalorder %s21, 1
      %p170 = por %p168, %p169
      %p171 = scmp.ne.s32.totalorder %s160, %s161
      %p172 = scmp.eq.s32.totalorder %s21, 0
      %p173 = por %p171, %p172
      %p174 = scmp.ne.s32.totalorder %s160, %s161
      %p175 = scmp.eq.s32.totalorder %s22, 1
      %p176 = por %p174, %p175
      %p178 = scmp.ne.s32.totalorder %s161, %s177
      %p179 = scmp.eq.s32.totalorder %s22, 0
      %p180 = por %p178, %p179
      %p181 = scmp.le.s32.totalorder 1, %s16
      %p182 = scmp.lt.s32.totalorder %s16, 3
      %p183 = pnand %p181, %p182
      %p184 = pneg %p183
      // Predicated region
      $region9: #{tpu_custom_call.1} parent=5 // pred_check
        _
      $region10: #{tpu_custom_call.1} parent=5 // pred_check_branch
        %186 = sbr.rel (%p183) target = $region12
      $region11: #{tpu_custom_call.1} parent=5 // pred_region
        %s187 = ssub.s32 %s16, 1
        // Predicated region
        $region13: #{tpu_custom_call.1} parent=11 // pred_check
          %p188 = pneg %p63
        $region14: #{tpu_custom_call.1} parent=11 // pred_check_branch
          %190 = sbr.rel (%p188) target = $region16
        $region15: #{tpu_custom_call.1} parent=11 // pred_region
          _
        $region16: #{tpu_custom_call.1} parent=11 // pred_fallthru
          _
        // Predicated region
        $region17: #{tpu_custom_call.1} parent=11 // pred_check
          %p191 = pneg %p84
        $region18: #{tpu_custom_call.1} parent=11 // pred_check_branch
          %193 = sbr.rel (%p191) target = $region20
        $region19: #{tpu_custom_call.1} parent=11 // pred_region
          _
        $region20: #{tpu_custom_call.1} parent=11 // pred_fallthru
          _
        // Predicated region
        $region21: #{tpu_custom_call.1} parent=11 // pred_check
          %p194 = pneg %p105
        $region22: #{tpu_custom_call.1} parent=11 // pred_check_branch
          %196 = sbr.rel (%p194) target = $region24
        $region23: #{tpu_custom_call.1} parent=11 // pred_region
          _
        $region24: #{tpu_custom_call.1} parent=11 // pred_fallthru
          _
        // Predicated region
        $region25: #{tpu_custom_call.1} parent=11 // pred_check
          %p197 = pneg %p126
        $region26: #{tpu_custom_call.1} parent=11 // pred_check_branch
          %199 = sbr.rel (%p197) target = $region28
        $region27: #{tpu_custom_call.1} parent=11 // pred_region
          %201 = vsyncadd [#allocation3], 0
          %s202 = sshll.u32 %s4, 4
          %s203 = int_to_ptr.hbm [resolvable:$true] %s202
          %s204 = sshll.u32 [#allocation2], 4
          %s205 = int_to_ptr.vmem [resolvable:$true] %s204
          %210 = dma.hbm_to_vmem [thread:$0]  %s203, 2048, %s205, [#allocation3], 128, 128, 8
        $region28: #{tpu_custom_call.1} parent=11 // pred_fallthru
          _
        // Predicated region
        $region29: #{tpu_custom_call.1} parent=11 // pred_check
          %p211 = pneg %p147
        $region30: #{tpu_custom_call.1} parent=11 // pred_check_branch
          %213 = sbr.rel (%p211) target = $region32
        $region31: #{tpu_custom_call.1} parent=11 // pred_region
          _
        $region32: #{tpu_custom_call.1} parent=11 // pred_fallthru
          _
      $region12: #{tpu_custom_call.1} parent=5 // pred_fallthru
        _
      %p214 = scmp.lt.s32.totalorder %s16, 2
      // Predicated region
      $region33: #{tpu_custom_call.1} parent=5 // pred_check
        %p215 = pneg %p214
      $region34: #{tpu_custom_call.1} parent=5 // pred_check_branch
        %217 = sbr.rel (%p215) target = $region36
      $region35: #{tpu_custom_call.1} parent=5 // pred_region
        // Predicated region
        $region37: #{tpu_custom_call.1} parent=35 // pred_check
          %p218 = pneg %p36
        $region38: #{tpu_custom_call.1} parent=35 // pred_check_branch
          %220 = sbr.rel (%p218) target = $region40
        $region39: #{tpu_custom_call.1} parent=35 // pred_region
          %p221 = scmp.lt.s32.totalorder %s16, 1
          %s222 = scalar_select %p221, %s16, 1
          %s223 = smul.addr %s222, 8
          %s224 = scalar_lea.vmem %s0, %s223
        $region40: #{tpu_custom_call.1} parent=35 // pred_fallthru
          _
      $region36: #{tpu_custom_call.1} parent=5 // pred_fallthru
        _
      %p225 = scmp.le.s32.totalorder 1, %s16
      %p226 = scmp.lt.s32.totalorder %s16, 3
      %p227 = pnand %p225, %p226
      %p228 = pneg %p227
      // Predicated region
      $region41: #{tpu_custom_call.1} parent=5 // pred_check
        _
      $region42: #{tpu_custom_call.1} parent=5 // pred_check_branch
        %230 = sbr.rel (%p227) target = $region44
      $region43: #{tpu_custom_call.1} parent=5 // pred_region
        %s231 = ssub.s32 %s16, 1
        // Predicated region
        $region45: #{tpu_custom_call.1} parent=43 // pred_check
          %p232 = pneg %p126
        $region46: #{tpu_custom_call.1} parent=43 // pred_check_branch
          %234 = sbr.rel (%p232) target = $region48
        $region47: #{tpu_custom_call.1} parent=43 // pred_region
          %236 = dma.done [#allocation3], 2048
        $region48: #{tpu_custom_call.1} parent=43 // pred_fallthru
          _
        %p237 = scmp.lt.s32.totalorder %s21, 1
        %s238 = scalar_select %p237, %s21, 1
        %s239 = smul.addr %s238, 8
        %s240 = scalar_lea.vmem %s0, %s239
        %p241 = pneg %p42
        %p242 = pneg %p39
        %p243 = pneg %p63
        %p244 = pneg %p60
        %p245 = pneg %p84
        %p246 = pneg %p81
        %p247 = pneg %p105
        %p248 = pneg %p102
        %p249 = pneg %p126
        %p250 = pneg %p123
        %p251 = pneg %p147
        %p252 = pneg %p144
        %p253 = pneg %p173
        %p254 = pneg %p170
        %s255 = sand.u32 %s160, 1
        %s256 = scalar_lea.sflag [#allocation4], %s255
        %s257 = sand.u32 %s160, 1
        %s258 = smul.addr %s257, 8
        %s259 = scalar_lea.vmem [#allocation5], %s258
        %p260 = scmp.lt.s32.totalorder %s21, 1
        %s261 = scalar_select %p260, %s21, 1
        %s262 = smul.addr %s261, 8
        %s263 = scalar_lea.vmem %s0, %s262
        %v264 = vld [vmem:[%s263] sm:$0xff]
        %v265 = vld [vmem:[%s1] sm:$0xff]
        %v266 = vld [vmem:[%s1 + $0x8] sm:$0xff]
        %v267 = vld [vmem:[%s1 + $0x10] sm:$0xff]
        %v268 = vld [vmem:[%s1 + $0x18] sm:$0xff]
        %v269 = vld [vmem:[%s1 + $0x20] sm:$0xff]
        %v270 = vld [vmem:[%s1 + $0x28] sm:$0xff]
        %v271 = vld [vmem:[%s1 + $0x30] sm:$0x1]
        %v272 = vlaneseq
        %v273 = vand.u32 %v272, 127
        %v274 = vld [vmem:[%s3] sm:$0x1]
        %v276 = vperm.slane %v274, 0
        %278 = vset.pattern.permute.xlu0 0
        %279 = vperm.xlu0 %278, %v264
        %v280 = vpop.permute.xlu0 %279
        %vm281 = vcmp.eq.s32.totalorder %v280, %v273
        %v282 = vsel %vm281, 1, 0
        %v283 = vcvt.s32.f32 %v282
        %vm284 = vcmask 400384
        %v286 = vsel %vm284, %v283, 0
        %vm288 = vcmask 1040384
        %v290 = vsel %vm288, %v271, 0
        %292 = vmatpush.msra.mxu0 0.0
        %293 = vmatpush.msra.mxu0 0.0
        %294 = vmatpush.msra.mxu0 0.0
        %295 = vmatpush.msra.mxu0 0.0
        %296 = vmatpush.msra.mxu0 0.0
        %297 = vmatpush.msra.mxu0 0.0
        %298 = vmatpush.msra.mxu0 0.0
        %299 = vmatpush.msra.mxu0 0.0
        %300 = vmatpush.msra.mxu0 0.0
        %301 = vmatpush.msra.mxu0 %v290
        %302 = vmatpush.msra.mxu0 %v270
        %303 = vmatpush.msra.mxu0 %v269
        %304 = vmatpush.msra.mxu0 %v268
        %305 = vmatpush.msra.mxu0 %v267
        %306 = vmatpush.msra.mxu0 %v266
        %307 = vmatpush.msra.mxu0 %v265
        %308 = vmatmul.f32.gmra.mxu0 %v286
        %v309 = vpop.f32.mrf.mxu0
        %v310 = vadd.f32 0.0, %v309
        %311 = vdwg.mxu0
        %v312 = vld [vmem:[%s2] sm:$0xff]
        %v313 = vld [vmem:[%s2 + $0x8] sm:$0xff]
        %vm314 = vcmask 130048
        %v316 = vsel %vm314, %v310, 0
        %318 = vmatpush.msra.mxu0 0.0
        %319 = vmatpush.msra.mxu0 0.0
        %320 = vmatpush.msra.mxu0 0.0
        %321 = vmatpush.msra.mxu0 0.0
        %322 = vmatpush.msra.mxu0 0.0
        %323 = vmatpush.msra.mxu0 0.0
        %324 = vmatpush.msra.mxu0 0.0
        %325 = vmatpush.msra.mxu0 0.0
        %326 = vmatpush.msra.mxu0 0.0
        %327 = vmatpush.msra.mxu0 0.0
        %328 = vmatpush.msra.mxu0 0.0
        %329 = vmatpush.msra.mxu0 0.0
        %330 = vmatpush.msra.mxu0 0.0
        %331 = vmatpush.msra.mxu0 0.0
        %332 = vmatpush.msra.mxu0 %v313
        %333 = vmatpush.msra.mxu0 %v312
        %334 = vmatmul.f32.gmra.mxu0 %v316
        %v335 = vpop.f32.mrf.mxu0
        %v336 = vadd.f32 0.0, %v335
        %337 = vdwg.mxu0
        %v338 = vadd.f32 %v276, %v336
        %339 = vset.pattern.permute.xlu0 1
        %340 = vperm.xlu0 %339, %v264
        %v341 = vpop.permute.xlu0 %340
        %vm342 = vcmp.eq.s32.totalorder %v341, %v273
        %v343 = vsel %vm342, 1, 0
        %v344 = vcvt.s32.f32 %v343
        %v346 = vsel %vm284, %v344, 0
        %348 = vmatpush.msra.mxu0 0.0
        %349 = vmatpush.msra.mxu0 0.0
        %350 = vmatpush.msra.mxu0 0.0
        %351 = vmatpush.msra.mxu0 0.0
        %352 = vmatpush.msra.mxu0 0.0
        %353 = vmatpush.msra.mxu0 0.0
        %354 = vmatpush.msra.mxu0 0.0
        %355 = vmatpush.msra.mxu0 0.0
        %356 = vmatpush.msra.mxu0 0.0
        %357 = vmatpush.msra.mxu0 %v290
        %358 = vmatpush.msra.mxu0 %v270
        %359 = vmatpush.msra.mxu0 %v269
        %360 = vmatpush.msra.mxu0 %v268
        %361 = vmatpush.msra.mxu0 %v267
        %362 = vmatpush.msra.mxu0 %v266
        %363 = vmatpush.msra.mxu0 %v265
        %364 = vmatmul.f32.gmra.mxu0 %v346
        %v365 = vpop.f32.mrf.mxu0
        %v366 = vadd.f32 0.0, %v365
        %367 = vdwg.mxu0
        %v368 = vld [vmem:[%s2 + $0x10] sm:$0xff]
        %v369 = vld [vmem:[%s2 + $0x18] sm:$0xff]
        %v371 = vsel %vm314, %v366, 0
        %373 = vmatpush.msra.mxu0 0.0
        %374 = vmatpush.msra.mxu0 0.0
        %375 = vmatpush.msra.mxu0 0.0
        %376 = vmatpush.msra.mxu0 0.0
        %377 = vmatpush.msra.mxu0 0.0
        %378 = vmatpush.msra.mxu0 0.0
        %379 = vmatpush.msra.mxu0 0.0
        %380 = vmatpush.msra.mxu0 0.0
        %381 = vmatpush.msra.mxu0 0.0
        %382 = vmatpush.msra.mxu0 0.0
        %383 = vmatpush.msra.mxu0 0.0
        %384 = vmatpush.msra.mxu0 0.0
        %385 = vmatpush.msra.mxu0 0.0
        %386 = vmatpush.msra.mxu0 0.0
        %387 = vmatpush.msra.mxu0 %v369
        %388 = vmatpush.msra.mxu0 %v368
        %389 = vmatmul.f32.gmra.mxu0 %v371
        %v390 = vpop.f32.mrf.mxu0
        %v391 = vadd.f32 0.0, %v390
        %392 = vdwg.mxu0
        %v393 = vadd.f32 %v338, %v391
        %394 = vset.pattern.permute.xlu0 2
        %395 = vperm.xlu0 %394, %v264
        %v396 = vpop.permute.xlu0 %395
        %vm397 = vcmp.eq.s32.totalorder %v396, %v273
        %v398 = vsel %vm397, 1, 0
        %v399 = vcvt.s32.f32 %v398
        %v401 = vsel %vm284, %v399, 0
        %403 = vmatpush.msra.mxu0 0.0
        %404 = vmatpush.msra.mxu0 0.0
        %405 = vmatpush.msra.mxu0 0.0
        %406 = vmatpush.msra.mxu0 0.0
        %407 = vmatpush.msra.mxu0 0.0
        %408 = vmatpush.msra.mxu0 0.0
        %409 = vmatpush.msra.mxu0 0.0
        %410 = vmatpush.msra.mxu0 0.0
        %411 = vmatpush.msra.mxu0 0.0
        %412 = vmatpush.msra.mxu0 %v290
        %413 = vmatpush.msra.mxu0 %v270
        %414 = vmatpush.msra.mxu0 %v269
        %415 = vmatpush.msra.mxu0 %v268
        %416 = vmatpush.msra.mxu0 %v267
        %417 = vmatpush.msra.mxu0 %v266
        %418 = vmatpush.msra.mxu0 %v265
        %419 = vmatmul.f32.gmra.mxu0 %v401
        %v420 = vpop.f32.mrf.mxu0
        %v421 = vadd.f32 0.0, %v420
        %422 = vdwg.mxu0
        %v423 = vld [vmem:[%s2 + $0x20] sm:$0xff]
        %v424 = vld [vmem:[%s2 + $0x28] sm:$0xff]
        %v426 = vsel %vm314, %v421, 0
        %428 = vmatpush.msra.mxu0 0.0
        %429 = vmatpush.msra.mxu0 0.0
        %430 = vmatpush.msra.mxu0 0.0
        %431 = vmatpush.msra.mxu0 0.0
        %432 = vmatpush.msra.mxu0 0.0
        %433 = vmatpush.msra.mxu0 0.0
        %434 = vmatpush.msra.mxu0 0.0
        %435 = vmatpush.msra.mxu0 0.0
        %436 = vmatpush.msra.mxu0 0.0
        %437 = vmatpush.msra.mxu0 0.0
        %438 = vmatpush.msra.mxu0 0.0
        %439 = vmatpush.msra.mxu0 0.0
        %440 = vmatpush.msra.mxu0 0.0
        %441 = vmatpush.msra.mxu0 0.0
        %442 = vmatpush.msra.mxu0 %v424
        %443 = vmatpush.msra.mxu0 %v423
        %444 = vmatmul.f32.gmra.mxu0 %v426
        %v445 = vpop.f32.mrf.mxu0
        %v446 = vadd.f32 0.0, %v445
        %447 = vdwg.mxu0
        %v448 = vadd.f32 %v393, %v446
        %449 = vset.pattern.permute.xlu0 3
        %450 = vperm.xlu0 %449, %v264
        %v451 = vpop.permute.xlu0 %450
        %vm452 = vcmp.eq.s32.totalorder %v451, %v273
        %v453 = vsel %vm452, 1, 0
        %v454 = vcvt.s32.f32 %v453
        %v456 = vsel %vm284, %v454, 0
        %458 = vmatpush.msra.mxu0 0.0
        %459 = vmatpush.msra.mxu0 0.0
        %460 = vmatpush.msra.mxu0 0.0
        %461 = vmatpush.msra.mxu0 0.0
        %462 = vmatpush.msra.mxu0 0.0
        %463 = vmatpush.msra.mxu0 0.0
        %464 = vmatpush.msra.mxu0 0.0
        %465 = vmatpush.msra.mxu0 0.0
        %466 = vmatpush.msra.mxu0 0.0
        %467 = vmatpush.msra.mxu0 %v290
        %468 = vmatpush.msra.mxu0 %v270
        %469 = vmatpush.msra.mxu0 %v269
        %470 = vmatpush.msra.mxu0 %v268
        %471 = vmatpush.msra.mxu0 %v267
        %472 = vmatpush.msra.mxu0 %v266
        %473 = vmatpush.msra.mxu0 %v265
        %474 = vmatmul.f32.gmra.mxu0 %v456
        %v475 = vpop.f32.mrf.mxu0
        %v476 = vadd.f32 0.0, %v475
        %477 = vdwg.mxu0
        %v478 = vld [vmem:[%s2 + $0x30] sm:$0xff]
        %v479 = vld [vmem:[%s2 + $0x38] sm:$0xff]
        %v481 = vsel %vm314, %v476, 0
        %483 = vmatpush.msra.mxu0 0.0
        %484 = vmatpush.msra.mxu0 0.0
        %485 = vmatpush.msra.mxu0 0.0
        %486 = vmatpush.msra.mxu0 0.0
        %487 = vmatpush.msra.mxu0 0.0
        %488 = vmatpush.msra.mxu0 0.0
        %489 = vmatpush.msra.mxu0 0.0
        %490 = vmatpush.msra.mxu0 0.0
        %491 = vmatpush.msra.mxu0 0.0
        %492 = vmatpush.msra.mxu0 0.0
        %493 = vmatpush.msra.mxu0 0.0
        %494 = vmatpush.msra.mxu0 0.0
        %495 = vmatpush.msra.mxu0 0.0
        %496 = vmatpush.msra.mxu0 0.0
        %497 = vmatpush.msra.mxu0 %v479
        %498 = vmatpush.msra.mxu0 %v478
        %499 = vmatmul.f32.gmra.mxu0 %v481
        %v500 = vpop.f32.mrf.mxu0
        %v501 = vadd.f32 0.0, %v500
        %502 = vdwg.mxu0
        %v503 = vadd.f32 %v448, %v501
        %v504 = vmax.f32 %v503, 0.0
        %v505 = vld [vmem:[#allocation2] sm:$0xff]
        %v506 = vld [vmem:[#allocation2 + $0x8] sm:$0xff]
        %v507 = vld [vmem:[#allocation2 + $0x10] sm:$0xff]
        %v508 = vld [vmem:[#allocation2 + $0x18] sm:$0xff]
        %v509 = vld [vmem:[#allocation2 + $0x20] sm:$0xff]
        %v510 = vld [vmem:[#allocation2 + $0x28] sm:$0xff]
        %v511 = vld [vmem:[#allocation2 + $0x30] sm:$0xff]
        %v512 = vld [vmem:[#allocation2 + $0x38] sm:$0xff]
        %v513 = vld [vmem:[#allocation2 + $0x40] sm:$0xff]
        %v514 = vld [vmem:[#allocation2 + $0x48] sm:$0xff]
        %v515 = vld [vmem:[#allocation2 + $0x50] sm:$0xff]
        %v516 = vld [vmem:[#allocation2 + $0x58] sm:$0xff]
        %v517 = vld [vmem:[#allocation2 + $0x60] sm:$0xff]
        %v518 = vld [vmem:[#allocation2 + $0x68] sm:$0xff]
        %v519 = vld [vmem:[#allocation2 + $0x70] sm:$0xff]
        %v520 = vld [vmem:[#allocation2 + $0x78] sm:$0xff]
        %v521 = vld [vmem:[%s5] sm:$0x1]
        %v523 = vperm.slane %v521, 0
        %525 = vmatpush.msra.mxu0 %v520
        %526 = vmatpush.msra.mxu0 %v519
        %527 = vmatpush.msra.mxu0 %v518
        %528 = vmatpush.msra.mxu0 %v517
        %529 = vmatpush.msra.mxu0 %v516
        %530 = vmatpush.msra.mxu0 %v515
        %531 = vmatpush.msra.mxu0 %v514
        %532 = vmatpush.msra.mxu0 %v513
        %533 = vmatpush.msra.mxu0 %v512
        %534 = vmatpush.msra.mxu0 %v511
        %535 = vmatpush.msra.mxu0 %v510
        %536 = vmatpush.msra.mxu0 %v509
        %537 = vmatpush.msra.mxu0 %v508
        %538 = vmatpush.msra.mxu0 %v507
        %539 = vmatpush.msra.mxu0 %v506
        %540 = vmatpush.msra.mxu0 %v505
        %541 = vmatmul.f32.gmra.mxu0 %v504
        %v542 = vpop.f32.mrf.mxu0
        %v543 = vadd.f32 %v523, %v542
        %544 = vdwg.mxu0
        %545 = vmax.xlane.f32.xlu0 %v543
        %v546 = vpop.xlane.xlu0 %545
        %v547 = vsub.f32 %v543, %v546
        %v548 = vmul.f32 %v547, 1.442695
        %v549 = vpow.pop %v548
        %550 = vadd.xlane.f32.xlu0 %v549
        %v551 = vpop.xlane.xlu0 %550
        %v552 = vlog2.pop %v551
        %v553 = vmul.f32 %v552, 0.6931472
        %v554 = vsub.f32 %v547, %v553
        %555 = vst [vmem:[%s259] sm:$0xff] %v554
        %s556 = sand.u32 %s160, 1
        %s557 = scalar_lea.sflag [#allocation4], %s556
        %s558 = sand.u32 %s160, 1
        %s559 = smul.addr %s558, 8
        %s560 = scalar_lea.vmem [#allocation5], %s559
        // Predicated region
        $region49: #{tpu_custom_call.1} parent=43 // pred_check
          %p561 = pneg %p170
        $region50: #{tpu_custom_call.1} parent=43 // pred_check_branch
          %563 = sbr.rel (%p561) target = $region52
        $region51: #{tpu_custom_call.1} parent=43 // pred_region
          %565 = vsyncadd %s557, 0
          %s566 = smul.addr %s21, 8
          %s567 = scalar_lea.hbm %s6, %s566
          %s569 = sshll.u32 %s560, 4
          %s570 = int_to_ptr.vmem [resolvable:$true] %s569
          %s571 = sshll.u32 %s567, 4
          %s572 = int_to_ptr.hbm [resolvable:$true] %s571
          %574 = dma.vmem_to_hbm [thread:$0]  %s570, 128, %s572, %s557
        $region52: #{tpu_custom_call.1} parent=43 // pred_fallthru
          _
      $region44: #{tpu_custom_call.1} parent=5 // pred_fallthru
        _
      %p575 = scmp.le.s32.totalorder 2, %s16
      // Predicated region
      $region53: #{tpu_custom_call.1} parent=5 // pred_check
        %p576 = pneg %p575
      $region54: #{tpu_custom_call.1} parent=5 // pred_check_branch
        %578 = sbr.rel (%p576) target = $region56
      $region55: #{tpu_custom_call.1} parent=5 // pred_region
        %s579 = ssub.s32 %s16, 2
        // Predicated region
        $region57: #{tpu_custom_call.1} parent=55 // pred_check
          %p580 = pneg %p176
        $region58: #{tpu_custom_call.1} parent=55 // pred_check_branch
          %582 = sbr.rel (%p580) target = $region60
        $region59: #{tpu_custom_call.1} parent=55 // pred_region
          %s583 = sand.u32 %s161, 1
          %s584 = scalar_lea.sflag [#allocation4], %s583
          %s585 = sand.u32 %s161, 1
          %s586 = smul.addr %s585, 8
          %s587 = scalar_lea.vmem [#allocation5], %s586
          %589 = dma.done %s584, 128
        $region60: #{tpu_custom_call.1} parent=55 // pred_fallthru
          _
      $region56: #{tpu_custom_call.1} parent=5 // pred_fallthru
        _
    $region6: #{tpu_custom_call.1} parent=1 // loop_footer
      %s20 = sadd.s32 1, %s16
    $region7: #{tpu_custom_call.1} parent=1 // loop_footer_branch
      %15 = sbr.rel target = $region3
    $region8: #{tpu_custom_call.1} parent=1 // loop_exit
      _
    %590 = vsyncpa [#allocation3], 1
    %s591 = scalar_lea.sflag [#allocation3], 1
    %592 = vsyncpa %s591, 1
    %593 = vsyncpa [#allocation4], 1
    %s594 = scalar_lea.sflag [#allocation4], 1
    %595 = vsyncpa %s594, 1

</llo_original>
